<compile_context>
chip_gen: v7x
topology: tpu7x:2x2x1
jax: 0.10.0
libtpu: 0.0.40
codegen_flags: <defaults>
</compile_context>

<pallas_src>
import numpy as np
import jax
import jax.numpy as jnp
from jax import lax
from jax.experimental import pallas as pl
from jax.experimental.pallas import tpu as pltpu


# ---------------------------------------------------------------------------
# Deterministic parameter construction (mirrors CSQLoss.__init__ / get_hash_targets)
# ---------------------------------------------------------------------------
def hadamard(n):
    """Sylvester Hadamard matrix, n must be a power of 2."""
    assert n > 0 and (n & (n - 1)) == 0, "bit must be a power of 2"
    H = np.array([[1.0]], dtype=np.float64)
    while H.shape[0] < n:
        H = np.block([[H, H], [H, -H]])
    return H


def get_hash_targets(n_class, bit):
    H_K = hadamard(bit)
    H_2K = np.concatenate((H_K, -H_K), 0)
    assert H_2K.shape[0] >= n_class, "keep n_class <= 2*bit so no random fill is needed"
    return jnp.asarray(H_2K[:n_class], dtype=jnp.float32)


def _round_up(x, m):
    return (x + m - 1) // m * m


def _cdiv(a, b):
    return -(-a // b)


# ---------------------------------------------------------------------------
# Pallas kernel: tanh + hash-center gather (bf16 matmul) + fused BCE/Q partial sum
# ---------------------------------------------------------------------------
def make_csq_loss_kernel(lambda_, total_valid, tile_rows, width, grid_size, use_argmax):
    lam = float(lambda_)
    # Static: does the padded grid cover more elements than the true B*bit?
    mask_needed = grid_size * tile_rows * width > total_valid

    def csq_loss_kernel(u_ref, y_ref, ht_ref, out_ref):
        i = pl.program_id(0)

        x = u_ref[...].astype(jnp.float32)                     # (TR, W) raw logits

        if use_argmax:
            # torch semantics: hash_targets[y.argmax(axis=1)], first-max tie-break
            yv = y_ref[...].astype(jnp.float32)                # (TR, C)
            tr, C = yv.shape
            ymax = jnp.max(yv, axis=1, keepdims=True)
            col = lax.broadcasted_iota(jnp.int32, (tr, C), 1)
            cand = jnp.where(yv == ymax, col, C)
            idx = jnp.min(cand, axis=1, keepdims=True)
            onehot = (col == idx).astype(jnp.bfloat16)         # exact 0/1
            hc = jnp.dot(onehot, ht_ref[...],
                         preferred_element_type=jnp.float32)   # (TR, W), ±1
        else:
            # strictly one-hot labels: the gather IS a bf16 matmul (exact 0/±1)
            hc = jnp.dot(y_ref[...], ht_ref[...],
                         preferred_element_type=jnp.float32)   # (TR, W), ±1

        u = jnp.tanh(x)
        # hc is exactly ±1, so q == (p if target==1 else 1-p) with p = 0.5*(u+1)
        q = 0.5 + 0.5 * (u * hc)
        bce = -jnp.maximum(jnp.log(q), -100.0)                 # torch BCELoss clamp
        loss_elem = bce + lam * (jnp.abs(u) - 1.0) ** 2        # fused elementwise loss

        def store_partial(vals):
            partial = jnp.sum(vals, axis=(0, 1), keepdims=True)       # (1, 1)
            out_ref[...] = jnp.broadcast_to(partial, out_ref.shape)   # lane-dense splat

        if not mask_needed:
            store_partial(loss_elem)
        else:
            is_last = i == grid_size - 1

            @pl.when(jnp.logical_not(is_last))
            def _():
                store_partial(loss_elem)                       # unmasked fast path

            @pl.when(is_last)
            def _():
                # flat element index in the packed layout == original flat index,
                # so a single compare masks both wrapper padding and block padding
                row = lax.broadcasted_iota(jnp.int32, loss_elem.shape, 0)
                col = lax.broadcasted_iota(jnp.int32, loss_elem.shape, 1)
                flat = (i * tile_rows + row) * width + col
                store_partial(jnp.where(flat < total_valid, loss_elem, 0.0))

    return csq_loss_kernel


def csq_loss(u, y, hash_targets, lambda_, block_batch=1024, labels_one_hot=True):
    """CSQLoss forward (single-label path).

    labels_one_hot=True  -> lane-packed fast path (gather = bf16 one-hot matmul).
    labels_one_hot=False -> torch-faithful in-kernel argmax (soft / tied labels),
                            no lane packing.
    """
    B, bit = u.shape
    C = y.shape[1]
    assert hash_targets.shape == (C, bit)

    ht_bf16 = hash_targets.astype(jnp.bfloat16)                # exactly ±1 in bf16
    use_argmax = not labels_one_hot
    pack = (not use_argmax) and (bit < 128) and (128 % bit == 0)

    if pack:
        # Lane-pack the elementwise path: (B, bit) -> (B_rows, 128).
        P = 128 // bit
        B_pad = _round_up(B, P)
        if B_pad != B:
            u = jnp.pad(u, ((0, B_pad - B), (0, 0)))
            y = jnp.pad(y, ((0, B_pad - B), (0, 0)))
        B_rows = B_pad // P
        W = 128
        u2 = u.reshape(B_rows, W)                              # contiguous, free
        y2 = y.reshape(B_rows, P * C).astype(jnp.bfloat16)     # exact 0/1
        # block-diagonal hash targets kron(I_P, ht): (P*C, 128), exact 0/±1
        ht2 = jnp.kron(jnp.eye(P, dtype=jnp.float32),
                       hash_targets.astype(jnp.float32)).astype(jnp.bfloat16)
        y_cols = P * C
    else:
        P = 1
        B_rows, W = B, bit
        u2 = u
        y2 = y if use_argmax else y.astype(jnp.bfloat16)
        ht2 = ht_bf16
        y_cols = C

    # --- batch-row tiling --------------------------------------------------
    row_align = 16                                 # safe sublane multiple (f32 & bf16)
    req_rows = _round_up(max(1, int(block_batch) // P), row_align)
    # cap so the "parallel" axis has >= 2 tiles when possible (v7x dual-TC sharding)
    cap_rows = _round_up(_cdiv(B_rows, 2), row_align)
    tb_rows = max(row_align, min(req_rows, cap_rows))
    if tb_rows >= B_rows:
        tb_rows = B_rows                           # single full-extent tile
    G = _cdiv(B_rows, tb_rows)

    total_valid = B * bit
    kernel = make_csq_loss_kernel(lambda_, total_valid, tb_rows, W, G, use_argmax)

    flops = 2 * B_rows * y_cols * W + 12 * B * bit
    transcendentals = 2 * B * bit                  # tanh + one clamped log per element
    bytes_accessed = (u2.size * u2.dtype.itemsize + y2.size * y2.dtype.itemsize
                      + ht2.size * ht2.dtype.itemsize + G * 8 * 128 * 4)

    partials = pl.pallas_call(
        kernel,
        out_shape=jax.ShapeDtypeStruct((G * 8, 128), jnp.float32),
        grid=(G,),
        in_specs=[
            pl.BlockSpec((tb_rows, W), lambda i: (i, 0)),        # u  — batch tiled
            pl.BlockSpec((tb_rows, y_cols), lambda i: (i, 0)),   # y  — batch tiled
            pl.BlockSpec((ht2.shape[0], W), lambda i: (0, 0)),   # ht — VMEM resident
        ],
        out_specs=pl.BlockSpec((8, 128), lambda i: (i, 0)),
        compiler_params=pltpu.CompilerParams(
            dimension_semantics=("parallel",)),
        cost_estimate=pl.CostEstimate(flops=flops,
                                      transcendentals=transcendentals,
                                      bytes_accessed=bytes_accessed),
    )(u2, y2, ht2)

    per_tile = partials[0::8, 0]                   # one value per grid tile
    return jnp.sum(per_tile) / float(B * bit)


# ---------------------------------------------------------------------------
# Pure-JAX reference (torch BCELoss semantics, for self-check)
# ---------------------------------------------------------------------------
def csq_loss_ref(u, y, hash_targets, lambda_):
    u = jnp.tanh(u.astype(jnp.float32))
    hc = hash_targets[jnp.argmax(y, axis=1)]
    p = 0.5 * (u + 1.0)
    t = 0.5 * (hc + 1.0)
    bce = -(t * jnp.maximum(jnp.log(p), -100.0)
            + (1.0 - t) * jnp.maximum(jnp.log(1.0 - p), -100.0))
    center_loss = jnp.mean(bce)
    q_loss = jnp.mean((jnp.abs(u) - 1.0) ** 2)
    return center_loss + lambda_ * q_loss


if __name__ == "__main__":
    config = {"dataset": "cifar10", "n_class": 10, "lambda": 0.0001}
    batch, bit, n_class = 40, 64, config["n_class"]

    key = jax.random.PRNGKey(0)
    k_u, k_y, k_u2, k_y2 = jax.random.split(key, 4)

    u = jax.random.normal(k_u, (batch, bit), dtype=jnp.float32)          # network outputs
    labels = jax.random.randint(k_y, (batch,), 0, n_class)
    y = jax.nn.one_hot(labels, n_class, dtype=jnp.float32)               # one-hot labels
    hash_targets = get_hash_targets(n_class, bit)

    # 1) lane-packed fast path, f32 inputs, multi-tile grid + ragged last tile
    #    (block_batch=32 -> 16 packed rows/tile, G=2 so both v7x cores get a tile)
    loss = jax.block_until_ready(
        csq_loss(u, y, hash_targets, config["lambda"], block_batch=32))
    ref = csq_loss_ref(u, y, hash_targets, config["lambda"])
    assert np.allclose(np.asarray(loss), np.asarray(ref), rtol=1e-5, atol=1e-5), (loss, ref)

    # 2) bf16 network outputs (halves u HBM traffic, e.g. v5e default); kernel math stays f32
    u_bf16 = u.astype(jnp.bfloat16)
    loss_bf = jax.block_until_ready(
        csq_loss(u_bf16, y, hash_targets, config["lambda"], block_batch=32))
    ref_bf = csq_loss_ref(u_bf16.astype(jnp.float32), y, hash_targets, config["lambda"])
    assert np.allclose(np.asarray(loss_bf), np.asarray(ref_bf), rtol=1e-4, atol=1e-4), (loss_bf, ref_bf)

    # 3) argmax fallback path (soft / tied-label safe), no lane packing
    loss_am = jax.block_until_ready(
        csq_loss(u, y, hash_targets, config["lambda"], block_batch=32,
                 labels_one_hot=False))
    assert np.allclose(np.asarray(loss_am), np.asarray(ref), rtol=1e-5, atol=1e-5), (loss_am, ref)

    # 4) odd batch: exercises wrapper padding + lane-level masking in the packed path
    batch2 = 37
    u_odd = jax.random.normal(k_u2, (batch2, bit), dtype=jnp.float32)
    labels2 = jax.random.randint(k_y2, (batch2,), 0, n_class)
    y_odd = jax.nn.one_hot(labels2, n_class, dtype=jnp.float32)
    loss_odd = jax.block_until_ready(
        csq_loss(u_odd, y_odd, hash_targets, config["lambda"]))
    ref_odd = csq_loss_ref(u_odd, y_odd, hash_targets, config["lambda"])
    assert np.allclose(np.asarray(loss_odd), np.asarray(ref_odd), rtol=1e-5, atol=1e-5), (loss_odd, ref_odd)

    print("KERNEL_OK")
</pallas_src>

<mosaic_0001>
module attributes {stable_mosaic.version = 11 : i64} {
  func.func @csq_loss_kernel(%arg0: i32, %arg1: memref<16x128xf32, #tpu.memory_space<vmem>>, %arg2: memref<16x20xbf16, #tpu.memory_space<vmem>>, %arg3: memref<20x128xbf16, #tpu.memory_space<vmem>>, %arg4: memref<8x128xf32, #tpu.memory_space<vmem>>) attributes {dimension_semantics = [#tpu.dimension_semantics<parallel>], iteration_bounds = array<i64: 2>, scalar_prefetch = 0 : i64, scratch_operands = 0 : i64, tpu.core_type = #tpu.core_type<tc>, window_params = [{transform_indices = @transform_0, window_bounds = array<i64: 16, 128>}, {transform_indices = @transform_1, window_bounds = array<i64: 16, 20>}, {pipeline_mode = #tpu.pipeline_mode<synchronous>, transform_indices = @transform_2, window_bounds = array<i64: 20, 128>}, {transform_indices = @transform_3, window_bounds = array<i64: 8, 128>}]} {
    %c0 = arith.constant 0 : index
    %c0_0 = arith.constant 0 : index
    %0 = vector.load %arg1[%c0, %c0_0] : memref<16x128xf32, #tpu.memory_space<vmem>>, vector<16x128xf32>
    %c0_1 = arith.constant 0 : index
    %c0_2 = arith.constant 0 : index
    %1 = vector.load %arg2[%c0_1, %c0_2] : memref<16x20xbf16, #tpu.memory_space<vmem>>, vector<16x20xbf16>
    %c0_3 = arith.constant 0 : index
    %c0_4 = arith.constant 0 : index
    %2 = vector.load %arg3[%c0_3, %c0_4] : memref<20x128xbf16, #tpu.memory_space<vmem>>, vector<20x128xbf16>
    %cst = arith.constant dense<0.000000e+00> : vector<16x128xf32>
    %3 = tpu.matmul %1, %2, %cst {dimension_numbers = #tpu.dot_dimension_numbers<[1], [0], [0], [1], [0, 0, 1, 1], [], []>} : vector<16x20xbf16>, vector<20x128xbf16>, vector<16x128xf32> -> vector<16x128xf32>
    %4 = math.tanh %0 : vector<16x128xf32>
    %5 = arith.mulf %4, %3 : vector<16x128xf32>
    %cst_5 = arith.constant 5.000000e-01 : f32
    %6 = vector.broadcast %cst_5 : f32 to vector<16x128xf32>
    %7 = arith.mulf %6, %5 : vector<16x128xf32>
    %cst_6 = arith.constant 5.000000e-01 : f32
    %8 = vector.broadcast %cst_6 : f32 to vector<16x128xf32>
    %9 = arith.addf %8, %7 : vector<16x128xf32>
    %10 = math.log %9 : vector<16x128xf32>
    %cst_7 = arith.constant -1.000000e+02 : f32
    %11 = vector.broadcast %cst_7 : f32 to vector<16x128xf32>
    %12 = arith.maximumf %10, %11 : vector<16x128xf32>
    %cst_8 = arith.constant 0.000000e+00 : f32
    %13 = vector.broadcast %cst_8 : f32 to vector<16x128xf32>
    %14 = arith.subf %13, %12 : vector<16x128xf32>
    %15 = math.absf %4 : vector<16x128xf32>
    %cst_9 = arith.constant 1.000000e+00 : f32
    %16 = vector.broadcast %cst_9 : f32 to vector<16x128xf32>
    %17 = arith.subf %15, %16 : vector<16x128xf32>
    %18 = arith.mulf %17, %17 : vector<16x128xf32>
    %cst_10 = arith.constant 9.99999974E-5 : f32
    %19 = vector.broadcast %cst_10 : f32 to vector<16x128xf32>
    %20 = arith.mulf %19, %18 : vector<16x128xf32>
    %21 = arith.addf %14, %20 : vector<16x128xf32>
    %c1_i32 = arith.constant 1 : i32
    %22 = arith.cmpi eq, %arg0, %c1_i32 : i32
    %true = arith.constant true
    %23 = arith.xori %22, %true : i1
    %24 = arith.extui %23 : i1 to i32
    %c0_i32 = arith.constant 0 : i32
    %25 = arith.cmpi ne, %24, %c0_i32 : i32
    scf.if %25 {
      %28 = vector.shape_cast %21 : vector<16x128xf32> to vector<1x16x128xf32>
      %cst_12 = arith.constant dense<0.000000e+00> : vector<1xf32>
      %29 = vector.multi_reduction <add>, %28, %cst_12 [1, 2] : vector<1x16x128xf32> to vector<1xf32>
      %30 = vector.shape_cast %29 : vector<1xf32> to vector<1x1x1xf32>
      %31 = vector.extract %30[0, 0, 0] : f32 from vector<1x1x1xf32>
      %32 = vector.broadcast %31 : f32 to vector<1x1xf32>
      %33 = vector.shape_cast %32 : vector<1x1xf32> to vector<1x1xf32>
      %34 = vector.broadcast %33 : vector<1x1xf32> to vector<8x128xf32>
      %c0_13 = arith.constant 0 : index
      %c0_14 = arith.constant 0 : index
      %35 = vector.load %arg4[%c0_13, %c0_14] : memref<8x128xf32, #tpu.memory_space<vmem>>, vector<8x128xf32>
      tpu.vector_store %arg4[%c0_13, %c0_14], %34 {strides = array<i32>} : memref<8x128xf32, #tpu.memory_space<vmem>>, vector<8x128xf32>,
    } else {
    }
    %26 = arith.extui %22 : i1 to i32
    %c0_i32_11 = arith.constant 0 : i32
    %27 = arith.cmpi ne, %26, %c0_i32_11 : i32
    scf.if %27 {
      %28 = tpu.iota {dimensions = array<i32: 0>} : vector<16x128xi32>
      %29 = tpu.iota {dimensions = array<i32: 1>} : vector<16x128xi32>
      %c16_i32 = arith.constant 16 : i32
      %30 = arith.muli %arg0, %c16_i32 : i32
      %31 = vector.broadcast %30 : i32 to vector<16x128xi32>
      %32 = arith.addi %31, %28 : vector<16x128xi32>
      %c128_i32 = arith.constant 128 : i32
      %33 = vector.broadcast %c128_i32 : i32 to vector<16x128xi32>
      %34 = arith.muli %32, %33 : vector<16x128xi32>
      %35 = arith.addi %34, %29 : vector<16x128xi32>
      %c2560_i32 = arith.constant 2560 : i32
      %36 = vector.broadcast %c2560_i32 : i32 to vector<16x128xi32>
      %37 = arith.cmpi slt, %35, %36 : vector<16x128xi32>
      %cst_12 = arith.constant 0.000000e+00 : f32
      %38 = vector.broadcast %cst_12 : f32 to vector<16x128xf32>
      %39 = arith.select %37, %21, %38 : vector<16x128xi1>, vector<16x128xf32>
      %40 = vector.shape_cast %39 : vector<16x128xf32> to vector<1x16x128xf32>
      %cst_13 = arith.constant dense<0.000000e+00> : vector<1xf32>
      %41 = vector.multi_reduction <add>, %40, %cst_13 [1, 2] : vector<1x16x128xf32> to vector<1xf32>
      %42 = vector.shape_cast %41 : vector<1xf32> to vector<1x1x1xf32>
      %43 = vector.extract %42[0, 0, 0] : f32 from vector<1x1x1xf32>
      %44 = vector.broadcast %43 : f32 to vector<1x1xf32>
      %45 = vector.shape_cast %44 : vector<1x1xf32> to vector<1x1xf32>
      %46 = vector.broadcast %45 : vector<1x1xf32> to vector<8x128xf32>
      %c0_14 = arith.constant 0 : index
      %c0_15 = arith.constant 0 : index
      %47 = vector.load %arg4[%c0_14, %c0_15] : memref<8x128xf32, #tpu.memory_space<vmem>>, vector<8x128xf32>
      tpu.vector_store %arg4[%c0_14, %c0_15], %46 {strides = array<i32>} : memref<8x128xf32, #tpu.memory_space<vmem>>, vector<8x128xf32>,
    } else {
    }
    return
  }
  func.func @transform_0(%arg0: i32) -> (i32, i32) {
    %c0_i32 = arith.constant 0 : i32
    %c0_i32_0 = arith.constant 0 : i32
    return %arg0, %c0_i32 : i32, i32
  }
  func.func @transform_1(%arg0: i32) -> (i32, i32) {
    %c0_i32 = arith.constant 0 : i32
    %c0_i32_0 = arith.constant 0 : i32
    return %arg0, %c0_i32 : i32, i32
  }
  func.func @transform_2(%arg0: i32) -> (i32, i32) {
    %c0_i32 = arith.constant 0 : i32
    %c0_i32_0 = arith.constant 0 : i32
    %c0_i32_1 = arith.constant 0 : i32
    return %c0_i32, %c0_i32_0 : i32, i32
  }
  func.func @transform_3(%arg0: i32) -> (i32, i32) {
    %c0_i32 = arith.constant 0 : i32
    %c0_i32_0 = arith.constant 0 : i32
    return %arg0, %c0_i32 : i32, i32
  }
}

</mosaic_0001>

<llo_original>
// kernel: tpu_custom_call.1
$region0: #{tpu_custom_call.1}
  #allocation0 [shape = 'u32[]', space=smem, size = 0x4, offset = 0x4, fixed_abs, tag = 'smem constant byte address 0x4 - core index']
  #allocation1 [shape = 'u32[144,128]{1,0:T(1,128)}', space=vmem, size = 0x12000, scoped, tag = 'internal scratch']
  %s0 = inlined_call_operand.hbm [shape: f32[20,128], index: 0, kind: input, shape index: {}]
  %s1 = inlined_call_operand.hbm [shape: bf16[20,20], index: 1, kind: input, shape index: {}]
  %s2 = inlined_call_operand.hbm [shape: bf16[20,128], index: 2, kind: input, shape index: {}]
  %s3 = inlined_call_operand.hbm [shape: f32[16,128], index: 3, kind: output, shape index: {}]
  %s4 = sld [smem:[#allocation0]]
  $region65: #{tpu_custom_call.1} parent=0
    _
  %s6 = ssub.s32 1, %s4
  %s7 = scalar_select 0, %s6, %s4
  $region1: #{tpu_custom_call.1} parent=0
    #allocation2 [shape = 'u8[16384]{0}', space=vmem, size = 0x4000, scoped, tag = 'input window, operand 0']
    #allocation3 [shape = 's32[2]{0}', space=sflag, size = 0x8, scoped, tag = 'scoped memory for tpu_custom_call.1']
    #allocation4 [shape = 's32[2]{0}', space=sflag, size = 0x8, scoped, tag = 'scoped memory for tpu_custom_call.1']
    #allocation5 [shape = 'u8[8192]{0}', space=vmem, size = 0x2000, scoped, tag = 'input window, operand 1']
    #allocation6 [shape = 's32[2]{0}', space=sflag, size = 0x8, scoped, tag = 'scoped memory for tpu_custom_call.1']
    #allocation7 [shape = 'u8[6144]{0}', space=vmem, size = 0x1800, scoped, tag = 'input window, operand 2, single buffered']
    #allocation8 [shape = 'u8[8192]{0}', space=vmem, size = 0x2000, scoped, tag = 'output window, operand 0']
    %8 = vsyncpa [#allocation3], 0
    %s9 = scalar_lea.sflag [#allocation3], 1
    %10 = vsyncpa %s9, 0
    %11 = vsyncpa [#allocation6], 0
    %s12 = scalar_lea.sflag [#allocation6], 1
    %13 = vsyncpa %s12, 0
    %14 = vsyncpa [#allocation4], 0
    %s15 = scalar_lea.sflag [#allocation4], 1
    %16 = vsyncpa %s15, 0
    loop: start=0, step=1, limit=4
    $region2: #{tpu_custom_call.1} parent=1 // loop_pre_header
      _
    $region3: #{tpu_custom_call.1} parent=1 // loop_header
      %s18 = sphi 0, %s22
      %p19 = scmp.ge.s32.totalorder %s18, 4
      %s28 = sphi 0, %s30
      %s31 = sphi 0, %s28
      %s32 = sphi 0, %s31
      %s48 = sphi 0, %s32
      %s54 = sphi 0, %s56
      %s57 = sphi 0, %s54
      %s58 = sphi 0, %s57
      %s74 = sphi 0, %s58
      %s78 = sphi 0, %s78
      %s80 = sphi 0, %s78
      %s81 = sphi 0, %s80
      %s95 = sphi 0, %s81
      %s101 = sphi 0, %s103
      %s104 = sphi 0, %s101
      %s105 = sphi 0, %s104
      %s121 = sphi 0, %s105
    $region4: #{tpu_custom_call.1} parent=1 // loop_header_branch
      %21 = sbr.rel (%p19) target = $region8
    $region5: #{tpu_custom_call.1} parent=1 // loop_body
      %s23 = ssub.s32 %s18, 1
      %s24 = ssub.s32 %s18, 2
      %s25 = sadd.s32 %s18, 1
      %s26 = ssub.s32 %s18, %s25
      %p27 = scmp.eq.s32.totalorder %s26, 0
      %s29 = sadd.s32 %s28, 1
      %s30 = scalar_select %p27, %s28, %s29
      %p33 = pneg %p27
      %p34 = scmp.eq.s32.totalorder %s18, 1
      %p35 = por %p33, %p34
      %p36 = scmp.ne.s32.totalorder %s28, %s31
      %p37 = scmp.eq.s32.totalorder %s18, 0
      %p38 = por %p36, %p37
      %p39 = scmp.ne.s32.totalorder %s28, %s31
      %p40 = scmp.eq.s32.totalorder %s23, 1
      %p41 = por %p39, %p40
      %p42 = scmp.ne.s32.totalorder %s31, %s32
      %p43 = scmp.eq.s32.totalorder %s23, 0
      %p44 = por %p42, %p43
      %p45 = scmp.ne.s32.totalorder %s31, %s32
      %p46 = scmp.eq.s32.totalorder %s24, 1
      %p47 = por %p45, %p46
      %p49 = scmp.ne.s32.totalorder %s32, %s48
      %p50 = scmp.eq.s32.totalorder %s24, 0
      %p51 = por %p49, %p50
      %s52 = ssub.s32 %s18, %s25
      %p53 = scmp.eq.s32.totalorder %s52, 0
      %s55 = sadd.s32 %s54, 1
      %s56 = scalar_select %p53, %s54, %s55
      %p59 = pneg %p53
      %p60 = scmp.eq.s32.totalorder %s18, 1
      %p61 = por %p59, %p60
      %p62 = scmp.ne.s32.totalorder %s54, %s57
      %p63 = scmp.eq.s32.totalorder %s18, 0
      %p64 = por %p62, %p63
      %p65 = scmp.ne.s32.totalorder %s54, %s57
      %p66 = scmp.eq.s32.totalorder %s23, 1
      %p67 = por %p65, %p66
      %p68 = scmp.ne.s32.totalorder %s57, %s58
      %p69 = scmp.eq.s32.totalorder %s23, 0
      %p70 = por %p68, %p69
      %p71 = scmp.ne.s32.totalorder %s57, %s58
      %p72 = scmp.eq.s32.totalorder %s24, 1
      %p73 = por %p71, %p72
      %p75 = scmp.ne.s32.totalorder %s58, %s74
      %p76 = scmp.eq.s32.totalorder %s24, 0
      %p77 = por %p75, %p76
      %s79 = sadd.s32 %s78, 1
      %p82 = scmp.eq.s32.totalorder %s18, 1
      %p83 = scmp.ne.s32.totalorder %s78, %s80
      %p84 = scmp.eq.s32.totalorder %s18, 0
      %p85 = por %p83, %p84
      %p86 = scmp.ne.s32.totalorder %s78, %s80
      %p87 = scmp.eq.s32.totalorder %s23, 1
      %p88 = por %p86, %p87
      %p89 = scmp.ne.s32.totalorder %s80, %s81
      %p90 = scmp.eq.s32.totalorder %s23, 0
      %p91 = por %p89, %p90
      %p92 = scmp.ne.s32.totalorder %s80, %s81
      %p93 = scmp.eq.s32.totalorder %s24, 1
      %p94 = por %p92, %p93
      %p96 = scmp.ne.s32.totalorder %s81, %s95
      %p97 = scmp.eq.s32.totalorder %s24, 0
      %p98 = por %p96, %p97
      %s99 = ssub.s32 %s18, %s25
      %p100 = scmp.eq.s32.totalorder %s99, 0
      %s102 = sadd.s32 %s101, 1
      %s103 = scalar_select %p100, %s101, %s102
      %p106 = pneg %p100
      %p107 = scmp.eq.s32.totalorder %s18, 1
      %p108 = por %p106, %p107
      %p109 = scmp.ne.s32.totalorder %s101, %s104
      %p110 = scmp.eq.s32.totalorder %s18, 0
      %p111 = por %p109, %p110
      %p112 = scmp.ne.s32.totalorder %s101, %s104
      %p113 = scmp.eq.s32.totalorder %s23, 1
      %p114 = por %p112, %p113
      %p115 = scmp.ne.s32.totalorder %s104, %s105
      %p116 = scmp.eq.s32.totalorder %s23, 0
      %p117 = por %p115, %p116
      %p118 = scmp.ne.s32.totalorder %s104, %s105
      %p119 = scmp.eq.s32.totalorder %s24, 1
      %p120 = por %p118, %p119
      %p122 = scmp.ne.s32.totalorder %s105, %s121
      %p123 = scmp.eq.s32.totalorder %s24, 0
      %p124 = por %p122, %p123
      %p125 = scmp.le.s32.totalorder 1, %s18
      %p126 = scmp.lt.s32.totalorder %s18, 3
      %p127 = pnand %p125, %p126
      %p128 = pneg %p127
      // Predicated region
      $region9: #{tpu_custom_call.1} parent=5 // pred_check
        _
      $region10: #{tpu_custom_call.1} parent=5 // pred_check_branch
        %130 = sbr.rel (%p127) target = $region12
      $region11: #{tpu_custom_call.1} parent=5 // pred_region
        %s131 = ssub.s32 %s18, 1
        // Predicated region
        $region13: #{tpu_custom_call.1} parent=11 // pred_check
          %p132 = pneg %p91
        $region14: #{tpu_custom_call.1} parent=11 // pred_check_branch
          %134 = sbr.rel (%p132) target = $region16
        $region15: #{tpu_custom_call.1} parent=11 // pred_region
          %s136 = ssub.s32 192, 192
          %137 = vsyncadd [#allocation6], %s136
          %s138 = sshll.u32 [#allocation7], 4
          %s139 = int_to_ptr.vmem [resolvable:$true] %s138
          %144 = dma.hbm_to_vmem [thread:$0]  %s2, 192, %s139, [#allocation6], 64, 64, 4
        $region16: #{tpu_custom_call.1} parent=11 // pred_fallthru
          _
      $region12: #{tpu_custom_call.1} parent=5 // pred_fallthru
        _
      %p145 = scmp.lt.s32.totalorder %s18, 2
      // Predicated region
      $region17: #{tpu_custom_call.1} parent=5 // pred_check
        %p146 = pneg %p145
      $region18: #{tpu_custom_call.1} parent=5 // pred_check_branch
        %148 = sbr.rel (%p146) target = $region20
      $region19: #{tpu_custom_call.1} parent=5 // pred_region
        // Predicated region
        $region21: #{tpu_custom_call.1} parent=19 // pred_check
          %p149 = pneg %p38
        $region22: #{tpu_custom_call.1} parent=19 // pred_check_branch
          %151 = sbr.rel (%p149) target = $region24
        $region23: #{tpu_custom_call.1} parent=19 // pred_region
          %s152 = sand.u32 %s28, 1
          %s153 = scalar_lea.sflag [#allocation3], %s152
          %s154 = sand.u32 %s28, 1
          %s155 = smul.addr %s154, 16
          %s156 = scalar_lea.vmem [#allocation2], %s155
          %s157 = smul.u32 2, %s18
          %s158 = ssub.s32 3, %s157
          %p159 = scmp.lt.s32.totalorder %s158, 2
          %s160 = scalar_select %p159, %s158, 2
          %s161 = smul.u32 128, %s160
          %s163 = ssub.s32 256, %s161
          %164 = vsyncadd %s153, %s163
          %p165 = scmp.ne.s32.totalorder 0, %s161
          %s166 = smul.addr %s157, 128
          %s167 = scalar_lea.hbm %s0, %s166
          %s168 = smul.u32 8, %s160
          %s169 = sshll.u32 %s156, 4
          %s170 = int_to_ptr.vmem [resolvable:$true] %s169
          %s171 = sshll.u32 %s168, 4
          %175 = dma.hbm_to_vmem [thread:$0]  (%p165), %s167, %s171, %s170, %s153, 128, 128, 8
        $region24: #{tpu_custom_call.1} parent=19 // pred_fallthru
          _
        // Predicated region
        $region25: #{tpu_custom_call.1} parent=19 // pred_check
          %p176 = pneg %p64
        $region26: #{tpu_custom_call.1} parent=19 // pred_check_branch
          %178 = sbr.rel (%p176) target = $region28
        $region27: #{tpu_custom_call.1} parent=19 // pred_region
          %s179 = sand.u32 %s18, 1
          %s180 = scalar_lea.sflag [#allocation6], %s179
          %s181 = sand.u32 %s54, 1
          %s182 = smul.addr %s181, 8
          %s183 = scalar_lea.vmem [#allocation5], %s182
          %s184 = smul.u32 2, %s18
          %s185 = ssub.s32 3, %s184
          %p186 = scmp.lt.s32.totalorder %s185, 2
          %s187 = scalar_select %p186, %s185, 2
          %s188 = smul.u32 64, %s187
          %s190 = ssub.s32 128, %s188
          %191 = vsyncadd %s180, %s190
          %p192 = scmp.ne.s32.totalorder 0, %s188
          %s193 = smul.addr %s184, 64
          %s194 = scalar_lea.hbm %s1, %s193
          %s195 = smul.u32 4, %s187
          %s196 = sshll.u32 %s183, 4
          %s197 = int_to_ptr.vmem [resolvable:$true] %s196
          %s198 = sshll.u32 %s195, 4
          %202 = dma.hbm_to_vmem [thread:$0]  (%p192), %s194, %s198, %s197, %s180, 64, 64, 4
        $region28: #{tpu_custom_call.1} parent=19 // pred_fallthru
          _
      $region20: #{tpu_custom_call.1} parent=5 // pred_fallthru
        _
      %p203 = scmp.le.s32.totalorder 1, %s18
      %p204 = scmp.lt.s32.totalorder %s18, 3
      %p205 = pnand %p203, %p204
      %p206 = pneg %p205
      // Predicated region
      $region29: #{tpu_custom_call.1} parent=5 // pred_check
        _
      $region30: #{tpu_custom_call.1} parent=5 // pred_check_branch
        %208 = sbr.rel (%p205) target = $region32
      $region31: #{tpu_custom_call.1} parent=5 // pred_region
        %s209 = ssub.s32 %s18, 1
        %s210 = sand.u32 %s31, 1
        %s211 = scalar_lea.sflag [#allocation3], %s210
        %s212 = sand.u32 %s31, 1
        %s213 = smul.addr %s212, 16
        %s214 = scalar_lea.vmem [#allocation2], %s213
        // Predicated region
        $region33: #{tpu_custom_call.1} parent=31 // pred_check
          %p215 = pneg %p44
        $region34: #{tpu_custom_call.1} parent=31 // pred_check_branch
          %217 = sbr.rel (%p215) target = $region36
        $region35: #{tpu_custom_call.1} parent=31 // pred_region
          %218 = dma.done %s211, 256
        $region36: #{tpu_custom_call.1} parent=31 // pred_fallthru
          _
        %s219 = sand.u32 %s23, 1
        %s220 = scalar_lea.sflag [#allocation6], %s219
        %s221 = sand.u32 %s57, 1
        %s222 = smul.addr %s221, 8
        %s223 = scalar_lea.vmem [#allocation5], %s222
        // Predicated region
        $region37: #{tpu_custom_call.1} parent=31 // pred_check
          %p224 = pneg %p70
        $region38: #{tpu_custom_call.1} parent=31 // pred_check_branch
          %226 = sbr.rel (%p224) target = $region40
        $region39: #{tpu_custom_call.1} parent=31 // pred_region
          %227 = dma.done %s220, 128
        $region40: #{tpu_custom_call.1} parent=31 // pred_fallthru
          _
        // Predicated region
        $region41: #{tpu_custom_call.1} parent=31 // pred_check
          %p228 = pneg %p91
        $region42: #{tpu_custom_call.1} parent=31 // pred_check_branch
          %230 = sbr.rel (%p228) target = $region44
        $region43: #{tpu_custom_call.1} parent=31 // pred_region
          %231 = dma.done [#allocation6], 192
        $region44: #{tpu_custom_call.1} parent=31 // pred_fallthru
          _
        %s232 = sand.u32 %s31, 1
        %s233 = scalar_lea.sflag [#allocation3], %s232
        %s234 = sand.u32 %s31, 1
        %s235 = smul.addr %s234, 16
        %s236 = scalar_lea.vmem [#allocation2], %s235
        %p237 = pneg %p44
        %p238 = pneg %p41
        %s239 = sand.u32 %s23, 1
        %s240 = scalar_lea.sflag [#allocation6], %s239
        %s241 = sand.u32 %s57, 1
        %s242 = smul.addr %s241, 8
        %s243 = scalar_lea.vmem [#allocation5], %s242
        %p244 = pneg %p70
        %p245 = pneg %p67
        %p246 = pneg %p91
        %p247 = pneg %p88
        %p248 = pneg %p117
        %p249 = pneg %p114
        %s250 = sand.u32 %s104, 1
        %s251 = scalar_lea.sflag [#allocation4], %s250
        %s252 = sand.u32 %s104, 1
        %s253 = smul.addr %s252, 8
        %s254 = scalar_lea.vmem [#allocation8], %s253
        %s255 = smul.u32 2, %s23
        %s256 = ssub.s32 3, %s255
        %p257 = scmp.lt.s32.totalorder %s256, 2
        %s258 = scalar_select %p257, %s256, 2
        %s259 = smul.u32 128, %s258
        %s260 = smul.u32 2, %s23
        %s261 = ssub.s32 3, %s260
        %p262 = scmp.lt.s32.totalorder %s261, 2
        %s263 = scalar_select %p262, %s261, 2
        %s264 = smul.u32 64, %s263
        %v266 = vld [vmem:[%s214] sm:$0xff]
        %v267 = vld [vmem:[%s214 + $0x8] sm:$0xff]
        %v268 = vld [vmem:[%s223] sm:$0xf]
        %v269 = vld [vmem:[%s223 + $0x4] sm:$0xf]
        %v270 = vld [vmem:[#allocation7] sm:$0xf]
        %v271 = vld [vmem:[#allocation7 + $0x4] sm:$0xf]
        %v272 = vld [vmem:[#allocation7 + $0x8] sm:$0x3]
        %v275 = vunpack.c.l.b16 %v268
        %v276 = vunpack.c.l.b16 %v269
        %v277 = vpack.c.b16 %v276, %v275
        %v281 = vunpack.c.l.b16 %v270
        %v282 = vunpack.c.l.b16 %v271
        %v283 = vunpack.c.l.b16 %v272
        %v284 = vpack.c.b16 %v282, %v281
        %v285 = vpack.c.b16 %v283, %v283
        %vm287 = vcmask 162816
        %v289 = vsel %vm287, %v277, 0
        %vm291 = vcmask 1041408
        %v293 = vsel %vm291, %v285, 0
        %295 = vmatprep.subr.bf16.mxu0 0
        %296 = vmatpush1.bf16.msra.mxu0 %v284
        %297 = vmatprep.subr.bf16.mxu0 0
        %298 = vmatpush1.bf16.msra.mxu0 %v293
        %299 = vmatprep.subr.bf16.mxu0 0
        %300 = vmatpush1.bf16.msra.mxu0 0
        %301 = vmatprep.subr.bf16.mxu0 0
        %302 = vmatpush1.bf16.msra.mxu0 0
        %303 = vmatprep.subr.bf16.mxu0 0
        %304 = vmatpush1.bf16.msra.mxu0 0
        %305 = vmatprep.subr.bf16.mxu0 0
        %306 = vmatpush1.bf16.msra.mxu0 0
        %307 = vmatprep.subr.bf16.mxu0 0
        %308 = vmatpush1.bf16.msra.mxu0 0
        %309 = vmatprep.subr.bf16.mxu0 0
        %310 = vmatpush1.bf16.msra.mxu0 0
        %311 = vmatprep.subr.bf16.mxu0 0
        %312 = vmatpush1.bf16.msra.mxu0 0
        %313 = vmatprep.subr.bf16.mxu0 0
        %314 = vmatpush1.bf16.msra.mxu0 0
        %315 = vmatprep.subr.bf16.mxu0 0
        %316 = vmatpush1.bf16.msra.mxu0 0
        %317 = vmatprep.subr.bf16.mxu0 0
        %318 = vmatpush1.bf16.msra.mxu0 0
        %319 = vmatprep.subr.bf16.mxu0 0
        %320 = vmatpush1.bf16.msra.mxu0 0
        %321 = vmatprep.subr.bf16.mxu0 0
        %322 = vmatpush1.bf16.msra.mxu0 0
        %323 = vmatprep.subr.bf16.mxu0 0
        %324 = vmatpush1.bf16.msra.mxu0 0
        %325 = vmatprep.subr.bf16.mxu0 0
        %326 = vmatpush1.bf16.msra.mxu0 0
        %327 = vmatprep.mubr.bf16.mxu0 0
        %328 = vmatmul.mubr.bf16.gmra.mrb[0].mxu0 %v289
        %v329 = vpop.f32.mrb[0].mxu0
        %v330 = vadd.f32 0.0, %v329
        %v331 = vpop.f32.mrb[0].mxu0
        %v332 = vpop.f32.mrb[0].mxu0
        %v333 = vadd.f32 0.0, %v332
        %v334 = vpop.f32.mrb[0].mxu0
        %335 = vdwg.mxu0
        %v336 = vtanh.pop %v266
        %v337 = vtanh.pop %v267
        %v338 = vmul.f32 %v336, %v330
        %v339 = vmul.f32 %v337, %v333
        %v340 = vmul.f32 %v338, 0.5
        %v341 = vmul.f32 %v339, 0.5
        %v342 = vadd.f32 %v340, 0.5
        %v343 = vadd.f32 %v341, 0.5
        %v344 = vlog2.pop %v342
        %v345 = vmul.f32 %v344, 0.6931472
        %v346 = vlog2.pop %v343
        %v347 = vmul.f32 %v346, 0.6931472
        %v348 = vmax.f32 %v345, -100.0
        %v349 = vmax.f32 %v347, -100.0
        %v350 = vsub.f32 0.0, %v348
        %v351 = vsub.f32 0.0, %v349
        %v352 = vand.u32 2147483647, %v336
        %v353 = vand.u32 2147483647, %v337
        %v354 = vsub.f32 %v352, 1.0
        %v355 = vsub.f32 %v353, 1.0
        %v356 = vmul.f32 %v354, %v354
        %v357 = vmul.f32 %v355, %v355
        %v358 = vmul.f32 %v356, 0.0001
        %v359 = vmul.f32 %v357, 0.0001
        %v360 = vadd.f32 %v350, %v358
        %v361 = vadd.f32 %v351, %v359
        %p362 = scmp.eq.s32.totalorder %s23, 1
        %p363 = scmp.ne.s32.totalorder %s23, 1
        // Predicated region
        $region45: #{tpu_custom_call.1} parent=31 // pred_check
          %p364 = pneg %p363
        $region46: #{tpu_custom_call.1} parent=31 // pred_check_branch
          %366 = sbr.rel (%p364) target = $region48
        $region47: #{tpu_custom_call.1} parent=31 // pred_region
          %v367 = vadd.f32 %v360, %v361
          %368 = vadd.xlane.f32.xlu0 %v367
          %v369 = vpop.xlane.xlu0 %368
          %v370 = vrot.slane %v369, 4
          %v371 = vadd.f32 %v369, %v370
          %v372 = vrot.slane %v371, 2
          %v373 = vadd.f32 %v371, %v372
          %v374 = vrot.slane %v373, 1
          %v375 = vadd.f32 %v373, %v374
          %s376 = vtos %v375
          %v377 = vstv %s376
          %378 = vst [vmem:[%s254] sm:$0xff] %v377
        $region48: #{tpu_custom_call.1} parent=31 // pred_fallthru
          _
        // Predicated region
        $region49: #{tpu_custom_call.1} parent=31 // pred_check
          %p379 = pneg %p362
        $region50: #{tpu_custom_call.1} parent=31 // pred_check_branch
          %381 = sbr.rel (%p379) target = $region52
        $region51: #{tpu_custom_call.1} parent=31 // pred_region
          %v382 = vlaneseq
          %v383 = vshrl.u32 %v382, 7
          %v384 = vadd.s32 %v383, 8
          %v385 = vlaneseq
          %v386 = vand.u32 %v385, 127
          %s387 = smul.u32 %s23, 16
          %v388 = vstv %s387
          %v389 = vadd.s32 %v388, %v383
          %v390 = vadd.s32 %v388, %v384
          %v391 = vmul.u32 %v389, 128
          %v392 = vmul.u32 %v390, 128
          %v393 = vadd.s32 %v391, %v386
          %v394 = vadd.s32 %v392, %v386
          %vm395 = vcmp.lt.s32.totalorder %v393, 2560
          %vm396 = vcmp.lt.s32.totalorder %v394, 2560
          %v397 = vsel %vm395, %v360, 0.0
          %v398 = vsel %vm396, %v361, 0.0
          %v399 = vadd.f32 %v397, %v398
          %400 = vadd.xlane.f32.xlu0 %v399
          %v401 = vpop.xlane.xlu0 %400
          %v402 = vrot.slane %v401, 4
          %v403 = vadd.f32 %v401, %v402
          %v404 = vrot.slane %v403, 2
          %v405 = vadd.f32 %v403, %v404
          %v406 = vrot.slane %v405, 1
          %v407 = vadd.f32 %v405, %v406
          %s408 = vtos %v407
          %v409 = vstv %s408
          %410 = vst [vmem:[%s254] sm:$0xff] %v409
        $region52: #{tpu_custom_call.1} parent=31 // pred_fallthru
          _
        %s411 = sand.u32 %s104, 1
        %s412 = scalar_lea.sflag [#allocation4], %s411
        %s413 = sand.u32 %s104, 1
        %s414 = smul.addr %s413, 8
        %s415 = scalar_lea.vmem [#allocation8], %s414
        // Predicated region
        $region53: #{tpu_custom_call.1} parent=31 // pred_check
          %p416 = pneg %p114
        $region54: #{tpu_custom_call.1} parent=31 // pred_check_branch
          %418 = sbr.rel (%p416) target = $region56
        $region55: #{tpu_custom_call.1} parent=31 // pred_region
          %s420 = ssub.s32 128, 128
          %421 = vsyncadd %s412, %s420
          %s422 = smul.addr %s23, 128
          %s423 = scalar_lea.hbm %s3, %s422
          %s425 = sshll.u32 %s415, 4
          %s426 = int_to_ptr.vmem [resolvable:$true] %s425
          %428 = dma.vmem_to_hbm [thread:$0]  %s426, 128, %s423, %s412
        $region56: #{tpu_custom_call.1} parent=31 // pred_fallthru
          _
      $region32: #{tpu_custom_call.1} parent=5 // pred_fallthru
        _
      %p429 = scmp.le.s32.totalorder 2, %s18
      // Predicated region
      $region57: #{tpu_custom_call.1} parent=5 // pred_check
        %p430 = pneg %p429
      $region58: #{tpu_custom_call.1} parent=5 // pred_check_branch
        %432 = sbr.rel (%p430) target = $region60
      $region59: #{tpu_custom_call.1} parent=5 // pred_region
        %s433 = ssub.s32 %s18, 2
        // Predicated region
        $region61: #{tpu_custom_call.1} parent=59 // pred_check
          %p434 = pneg %p120
        $region62: #{tpu_custom_call.1} parent=59 // pred_check_branch
          %436 = sbr.rel (%p434) target = $region64
        $region63: #{tpu_custom_call.1} parent=59 // pred_region
          %s437 = sand.u32 %s105, 1
          %s438 = scalar_lea.sflag [#allocation4], %s437
          %s439 = sand.u32 %s105, 1
          %s440 = smul.addr %s439, 8
          %s441 = scalar_lea.vmem [#allocation8], %s440
          %442 = dma.done %s438, 128
        $region64: #{tpu_custom_call.1} parent=59 // pred_fallthru
          _
      $region60: #{tpu_custom_call.1} parent=5 // pred_fallthru
        _
    $region6: #{tpu_custom_call.1} parent=1 // loop_footer
      %s22 = sadd.s32 1, %s18
    $region7: #{tpu_custom_call.1} parent=1 // loop_footer_branch
      %17 = sbr.rel target = $region3
    $region8: #{tpu_custom_call.1} parent=1 // loop_exit
      _
    %443 = vsyncpa [#allocation3], 1
    %s444 = scalar_lea.sflag [#allocation3], 1
    %445 = vsyncpa %s444, 1
    %446 = vsyncpa [#allocation6], 1
    %s447 = scalar_lea.sflag [#allocation6], 1
    %448 = vsyncpa %s447, 1
    %449 = vsyncpa [#allocation4], 1
    %s450 = scalar_lea.sflag [#allocation4], 1
    %451 = vsyncpa %s450, 1

</llo_original>
